<compile_context>
chip_gen: v7x
topology: tpu7x:2x2x1
jax: 0.10.0
libtpu: 0.0.40
codegen_flags: <defaults>
</compile_context>

<pallas_src>
import functools

import jax
import jax.numpy as jnp
from jax.experimental import pallas as pl
from jax.experimental.pallas import tpu as pltpu


def _round_up(x, m):
    return ((x + m - 1) // m) * m


def _cdiv(a, b):
    return (a + b - 1) // b


def actorlog_kernel(x_ref, wt_ref, bt_ref, w1_ref, b1_ref, w2_ref, b2_ref,
                    w3_ref, b3_ref, mean_ref, *, compute_dtype):
    cdt = compute_dtype

    # x tile arrives in its native (TM, D) layout (contiguous HBM slab).
    # One in-kernel XLU transpose puts the batch on the 128-lane axis so all
    # downstream matmuls / VPU / EUP ops and the store are lane-dense.
    xt = jnp.transpose(x_ref[...]).astype(cdt)               # (D, TM)

    # trunk: Linear + ReLU                  (F, TM)
    h = jnp.dot(wt_ref[...], xt, preferred_element_type=jnp.float32)
    h = jnp.maximum(h + bt_ref[...], 0.0)

    # MLP hidden layer 0: Linear + ReLU     (H, TM)
    h = jnp.dot(w1_ref[...], h.astype(cdt), preferred_element_type=jnp.float32)
    h = jnp.maximum(h + b1_ref[...], 0.0)

    # MLP hidden layer 1: Linear + ReLU     (H, TM)
    h = jnp.dot(w2_ref[...], h.astype(cdt), preferred_element_type=jnp.float32)
    h = jnp.maximum(h + b2_ref[...], 0.0)

    # MLP output layer (no activation)      (A, TM)
    out = jnp.dot(w3_ref[...], h.astype(cdt), preferred_element_type=jnp.float32)
    out = out + b3_ref[...]

    # Lane-dense tanh + unmasked store.
    mean_ref[...] = jnp.tanh(out)


def actorlog_forward(x, params, *, block_b=8192, compute_dtype=jnp.bfloat16,
                     x_buffers=2):
    """Actorlog forward. Returns (mean, std), each (B, num_actions) float32."""
    B, D = x.shape
    F = params["wt"].shape[0]          # feature_dim
    H = params["w1"].shape[0]          # hidden_dim
    A = params["w3"].shape[0]          # num_actions

    # ---- batch tiling (pad waste < 128 rows per tile, no host padding) ----
    block_b = max(128, _round_up(int(block_b), 128))
    nb = _cdiv(B, block_b)
    if nb == 1 and B > 256:
        nb = 2                              # v7x: give both TensorCores a tile
    if nb == 1:
        TM = B                              # single block == full array
    else:
        TM = _round_up(_cdiv(B, nb), 128)   # lane-dense output blocks

    # Weights shipped in the matmul compute dtype (cast once here, not per
    # grid step); biases stay f32 as (dout, 1) columns (broadcast along lanes).
    cdt = compute_dtype
    wt = params["wt"].astype(cdt)
    w1 = params["w1"].astype(cdt)
    w2 = params["w2"].astype(cdt)
    w3 = params["w3"].astype(cdt)
    bt = params["bt"].reshape(F, 1).astype(jnp.float32)
    b1 = params["b1"].reshape(H, 1).astype(jnp.float32)
    b2 = params["b2"].reshape(H, 1).astype(jnp.float32)
    b3 = params["b3"].reshape(A, 1).astype(jnp.float32)

    def resident(shape):
        # Full-array block, same block every grid step -> stays VMEM-resident.
        return pl.BlockSpec(shape, lambda i: (0,) * len(shape))

    x_spec_kwargs = {}
    if x_buffers is not None and x_buffers > 2:
        # Deeper prefetch on the only large DMA stream (opt-in; VMEM is ample).
        x_spec_kwargs["pipeline_mode"] = pl.Buffered(x_buffers)

    in_specs = [
        pl.BlockSpec((TM, D), lambda i: (i, 0), **x_spec_kwargs),  # x tile
        resident((F, D)), resident((F, 1)),            # trunk
        resident((H, F)), resident((H, 1)),            # MLP layer 0
        resident((H, H)), resident((H, 1)),            # MLP layer 1
        resident((A, H)), resident((A, 1)),            # MLP output
    ]
    out_specs = pl.BlockSpec((A, TM), lambda i: (0, i))

    wbytes = jnp.dtype(cdt).itemsize
    weight_bytes = wbytes * (F * D + H * F + H * H + A * H) + 4 * (F + H + H + A)
    cost = pl.CostEstimate(
        flops=2 * B * (F * D + H * F + H * H + A * H),
        transcendentals=B * A,                          # tanh
        bytes_accessed=4 * (B * D + B * A) + weight_bytes,
    )

    kernel = functools.partial(actorlog_kernel, compute_dtype=cdt)

    mean_t = pl.pallas_call(
        kernel,
        out_shape=jax.ShapeDtypeStruct((A, B), jnp.float32),
        grid_spec=pltpu.PrefetchScalarGridSpec(
            num_scalar_prefetch=0,
            grid=(nb,),
            in_specs=in_specs,
            out_specs=out_specs,
        ),
        compiler_params=pltpu.CompilerParams(
            dimension_semantics=("parallel",),
        ),
        cost_estimate=cost,
    )(x, wt, bt, w1, b1, w2, b2, w3, b3)

    mean = mean_t.T                                     # (B, A) for the caller
    # std does not depend on x: pure broadcast, computed outside the kernel.
    std = jnp.broadcast_to(jnp.exp(params["log_std"].reshape(1, A)), (B, A))
    return mean, std


def init_params(key, repr_dim, feature_dim, hidden_dim, num_actions):
    """Deterministic parameter init mirroring the PyTorch module.

    Weights in PyTorch's native (out_dim, in_dim) layout (kernel computes
    W @ x^T); biases zero, stored as (out_dim, 1); log_std zeros (1, A)."""
    ks = jax.random.split(key, 4)
    ortho = jax.nn.initializers.orthogonal

    def lin(k, din, dout, gain=1.0):
        w = ortho(scale=gain)(k, (dout, din), jnp.float32)   # (out, in)
        b = jnp.zeros((dout, 1), jnp.float32)
        return w, b

    wt, bt = lin(ks[0], repr_dim, feature_dim)                # trunk
    w1, b1 = lin(ks[1], feature_dim, hidden_dim)              # MLP layer 0
    w2, b2 = lin(ks[2], hidden_dim, hidden_dim)               # MLP layer 1
    w3, b3 = lin(ks[3], hidden_dim, num_actions, gain=0.01)   # last_gain=0.01
    log_std = jnp.zeros((1, num_actions), jnp.float32)

    return dict(wt=wt, bt=bt, w1=w1, b1=b1, w2=w2, b2=b2,
                w3=w3, b3=b3, log_std=log_std)


def reference_forward(x, p, compute_dtype=None):
    """Pure-JAX reference. If compute_dtype is given, matmul operands are
    cast to it (matching the kernel's MXU precision); accumulation is f32."""
    def cast(a):
        return a.astype(compute_dtype) if compute_dtype is not None else a

    def lin(h, w, b):
        y = jnp.dot(cast(h), cast(w).T, preferred_element_type=jnp.float32)
        return y + b.reshape(1, -1)

    h = jnp.maximum(lin(x, p["wt"], p["bt"]), 0.0)
    h = jnp.maximum(lin(h, p["w1"], p["b1"]), 0.0)
    h = jnp.maximum(lin(h, p["w2"], p["b2"]), 0.0)
    out = lin(h, p["w3"], p["b3"])
    mean = jnp.tanh(out)
    std = jnp.broadcast_to(jnp.exp(p["log_std"].reshape(1, -1)), mean.shape)
    return mean, std


if __name__ == "__main__":
    repr_dim = 32
    feature_dim = 32
    hidden_dim = 32
    num_actions = 8

    key = jax.random.PRNGKey(0)
    kx, kp, kx2 = jax.random.split(key, 3)
    params = init_params(kp, repr_dim, feature_dim, hidden_dim, num_actions)

    # --- small single-tile case (whole batch in one block) ------------------
    B = 8
    x = jax.random.normal(kx, (B, repr_dim), jnp.float32)
    fwd = jax.jit(functools.partial(actorlog_forward, block_b=8192,
                                    compute_dtype=jnp.bfloat16))
    mean, std = fwd(x, params)
    jax.block_until_ready((mean, std))

    ref_mean_bf16, ref_std = reference_forward(x, params,
                                               compute_dtype=jnp.bfloat16)
    ref_mean_f32, _ = reference_forward(x, params)
    assert mean.shape == (B, num_actions) and std.shape == (B, num_actions)
    assert jnp.allclose(mean, ref_mean_bf16, atol=1e-4, rtol=1e-4)
    assert jnp.allclose(mean, ref_mean_f32, atol=5e-3, rtol=5e-3)
    assert jnp.allclose(std, ref_std, atol=1e-6, rtol=1e-6)

    # --- multi-tile case with a partial last block ---------------------------
    # 300 rows, block_b=256 -> 2 tiles of TM=256; tile #2 has 44 valid rows,
    # exercising the tiled grid path and out-of-bounds tail masking.
    B2 = 300
    x2 = jax.random.normal(kx2, (B2, repr_dim), jnp.float32)
    fwd2 = jax.jit(functools.partial(actorlog_forward, block_b=256,
                                     compute_dtype=jnp.bfloat16))
    mean2, std2 = fwd2(x2, params)
    jax.block_until_ready((mean2, std2))

    ref_mean2, ref_std2 = reference_forward(x2, params,
                                            compute_dtype=jnp.bfloat16)
    assert mean2.shape == (B2, num_actions) and std2.shape == (B2, num_actions)
    assert jnp.allclose(mean2, ref_mean2, atol=1e-4, rtol=1e-4)
    assert jnp.allclose(std2, ref_std2, atol=1e-6, rtol=1e-6)

    print("KERNEL_OK")
</pallas_src>

<mosaic_0001>
module attributes {stable_mosaic.version = 11 : i64} {
  func.func @actorlog_kernel(%arg0: i32, %arg1: memref<8x32xf32, #tpu.memory_space<vmem>>, %arg2: memref<32x32xbf16, #tpu.memory_space<vmem>>, %arg3: memref<32x1xf32, #tpu.memory_space<vmem>>, %arg4: memref<32x32xbf16, #tpu.memory_space<vmem>>, %arg5: memref<32x1xf32, #tpu.memory_space<vmem>>, %arg6: memref<32x32xbf16, #tpu.memory_space<vmem>>, %arg7: memref<32x1xf32, #tpu.memory_space<vmem>>, %arg8: memref<8x32xbf16, #tpu.memory_space<vmem>>, %arg9: memref<8x1xf32, #tpu.memory_space<vmem>>, %arg10: memref<8x8xf32, #tpu.memory_space<vmem>>) attributes {dimension_semantics = [#tpu.dimension_semantics<parallel>], iteration_bounds = array<i64: 1>, scalar_prefetch = 0 : i64, scratch_operands = 0 : i64, tpu.core_type = #tpu.core_type<tc>, window_params = [{transform_indices = @transform_0, window_bounds = array<i64: 8, 32>}, {pipeline_mode = #tpu.pipeline_mode<synchronous>, transform_indices = @transform_1, window_bounds = array<i64: 32, 32>}, {pipeline_mode = #tpu.pipeline_mode<synchronous>, transform_indices = @transform_2, window_bounds = array<i64: 32, 1>}, {pipeline_mode = #tpu.pipeline_mode<synchronous>, transform_indices = @transform_3, window_bounds = array<i64: 32, 32>}, {pipeline_mode = #tpu.pipeline_mode<synchronous>, transform_indices = @transform_4, window_bounds = array<i64: 32, 1>}, {pipeline_mode = #tpu.pipeline_mode<synchronous>, transform_indices = @transform_5, window_bounds = array<i64: 32, 32>}, {pipeline_mode = #tpu.pipeline_mode<synchronous>, transform_indices = @transform_6, window_bounds = array<i64: 32, 1>}, {pipeline_mode = #tpu.pipeline_mode<synchronous>, transform_indices = @transform_7, window_bounds = array<i64: 8, 32>}, {pipeline_mode = #tpu.pipeline_mode<synchronous>, transform_indices = @transform_8, window_bounds = array<i64: 8, 1>}, {transform_indices = @transform_9, window_bounds = array<i64: 8, 8>}]} {
    %c0 = arith.constant 0 : index
    %c0_0 = arith.constant 0 : index
    %0 = vector.load %arg1[%c0, %c0_0] : memref<8x32xf32, #tpu.memory_space<vmem>>, vector<8x32xf32>
    %1 = tpu.transpose %0, [1, 0] : vector<8x32xf32> -> vector<32x8xf32>
    %2 = arith.truncf %1 : vector<32x8xf32> to vector<32x8xbf16>
    %c0_1 = arith.constant 0 : index
    %c0_2 = arith.constant 0 : index
    %3 = vector.load %arg2[%c0_1, %c0_2] : memref<32x32xbf16, #tpu.memory_space<vmem>>, vector<32x32xbf16>
    %cst = arith.constant dense<0.000000e+00> : vector<32x8xf32>
    %4 = tpu.matmul %3, %2, %cst {dimension_numbers = #tpu.dot_dimension_numbers<[1], [0], [0], [1], [0, 0, 1, 1], [], []>} : vector<32x32xbf16>, vector<32x8xbf16>, vector<32x8xf32> -> vector<32x8xf32>
    %c0_3 = arith.constant 0 : index
    %c0_4 = arith.constant 0 : index
    %5 = vector.load %arg3[%c0_3, %c0_4] : memref<32x1xf32, #tpu.memory_space<vmem>>, vector<32x1xf32>
    %6 = vector.broadcast %5 : vector<32x1xf32> to vector<32x8xf32>
    %7 = arith.addf %4, %6 : vector<32x8xf32>
    %cst_5 = arith.constant 0.000000e+00 : f32
    %8 = vector.broadcast %cst_5 : f32 to vector<32x8xf32>
    %9 = arith.maximumf %7, %8 : vector<32x8xf32>
    %c0_6 = arith.constant 0 : index
    %c0_7 = arith.constant 0 : index
    %10 = vector.load %arg4[%c0_6, %c0_7] : memref<32x32xbf16, #tpu.memory_space<vmem>>, vector<32x32xbf16>
    %11 = arith.truncf %9 : vector<32x8xf32> to vector<32x8xbf16>
    %cst_8 = arith.constant dense<0.000000e+00> : vector<32x8xf32>
    %12 = tpu.matmul %10, %11, %cst_8 {dimension_numbers = #tpu.dot_dimension_numbers<[1], [0], [0], [1], [0, 0, 1, 1], [], []>} : vector<32x32xbf16>, vector<32x8xbf16>, vector<32x8xf32> -> vector<32x8xf32>
    %c0_9 = arith.constant 0 : index
    %c0_10 = arith.constant 0 : index
    %13 = vector.load %arg5[%c0_9, %c0_10] : memref<32x1xf32, #tpu.memory_space<vmem>>, vector<32x1xf32>
    %14 = vector.broadcast %13 : vector<32x1xf32> to vector<32x8xf32>
    %15 = arith.addf %12, %14 : vector<32x8xf32>
    %cst_11 = arith.constant 0.000000e+00 : f32
    %16 = vector.broadcast %cst_11 : f32 to vector<32x8xf32>
    %17 = arith.maximumf %15, %16 : vector<32x8xf32>
    %c0_12 = arith.constant 0 : index
    %c0_13 = arith.constant 0 : index
    %18 = vector.load %arg6[%c0_12, %c0_13] : memref<32x32xbf16, #tpu.memory_space<vmem>>, vector<32x32xbf16>
    %19 = arith.truncf %17 : vector<32x8xf32> to vector<32x8xbf16>
    %cst_14 = arith.constant dense<0.000000e+00> : vector<32x8xf32>
    %20 = tpu.matmul %18, %19, %cst_14 {dimension_numbers = #tpu.dot_dimension_numbers<[1], [0], [0], [1], [0, 0, 1, 1], [], []>} : vector<32x32xbf16>, vector<32x8xbf16>, vector<32x8xf32> -> vector<32x8xf32>
    %c0_15 = arith.constant 0 : index
    %c0_16 = arith.constant 0 : index
    %21 = vector.load %arg7[%c0_15, %c0_16] : memref<32x1xf32, #tpu.memory_space<vmem>>, vector<32x1xf32>
    %22 = vector.broadcast %21 : vector<32x1xf32> to vector<32x8xf32>
    %23 = arith.addf %20, %22 : vector<32x8xf32>
    %cst_17 = arith.constant 0.000000e+00 : f32
    %24 = vector.broadcast %cst_17 : f32 to vector<32x8xf32>
    %25 = arith.maximumf %23, %24 : vector<32x8xf32>
    %c0_18 = arith.constant 0 : index
    %c0_19 = arith.constant 0 : index
    %26 = vector.load %arg8[%c0_18, %c0_19] : memref<8x32xbf16, #tpu.memory_space<vmem>>, vector<8x32xbf16>
    %27 = arith.truncf %25 : vector<32x8xf32> to vector<32x8xbf16>
    %cst_20 = arith.constant dense<0.000000e+00> : vector<8x8xf32>
    %28 = tpu.matmul %26, %27, %cst_20 {dimension_numbers = #tpu.dot_dimension_numbers<[1], [0], [0], [1], [0, 0, 1, 1], [], []>} : vector<8x32xbf16>, vector<32x8xbf16>, vector<8x8xf32> -> vector<8x8xf32>
    %c0_21 = arith.constant 0 : index
    %c0_22 = arith.constant 0 : index
    %29 = vector.load %arg9[%c0_21, %c0_22] : memref<8x1xf32, #tpu.memory_space<vmem>>, vector<8x1xf32>
    %30 = vector.broadcast %29 : vector<8x1xf32> to vector<8x8xf32>
    %31 = arith.addf %28, %30 : vector<8x8xf32>
    %32 = math.tanh %31 : vector<8x8xf32>
    %c0_23 = arith.constant 0 : index
    %c0_24 = arith.constant 0 : index
    %33 = vector.load %arg10[%c0_23, %c0_24] : memref<8x8xf32, #tpu.memory_space<vmem>>, vector<8x8xf32>
    tpu.vector_store %arg10[%c0_23, %c0_24], %32 {strides = array<i32>} : memref<8x8xf32, #tpu.memory_space<vmem>>, vector<8x8xf32>,
    return
  }
  func.func @transform_0(%arg0: i32) -> (i32, i32) {
    %c0_i32 = arith.constant 0 : i32
    %c0_i32_0 = arith.constant 0 : i32
    return %arg0, %c0_i32 : i32, i32
  }
  func.func @transform_1(%arg0: i32) -> (i32, i32) {
    %c0_i32 = arith.constant 0 : i32
    %c0_i32_0 = arith.constant 0 : i32
    %c0_i32_1 = arith.constant 0 : i32
    return %c0_i32, %c0_i32_0 : i32, i32
  }
  func.func @transform_2(%arg0: i32) -> (i32, i32) {
    %c0_i32 = arith.constant 0 : i32
    %c0_i32_0 = arith.constant 0 : i32
    %c0_i32_1 = arith.constant 0 : i32
    return %c0_i32, %c0_i32_0 : i32, i32
  }
  func.func @transform_3(%arg0: i32) -> (i32, i32) {
    %c0_i32 = arith.constant 0 : i32
    %c0_i32_0 = arith.constant 0 : i32
    %c0_i32_1 = arith.constant 0 : i32
    return %c0_i32, %c0_i32_0 : i32, i32
  }
  func.func @transform_4(%arg0: i32) -> (i32, i32) {
    %c0_i32 = arith.constant 0 : i32
    %c0_i32_0 = arith.constant 0 : i32
    %c0_i32_1 = arith.constant 0 : i32
    return %c0_i32, %c0_i32_0 : i32, i32
  }
  func.func @transform_5(%arg0: i32) -> (i32, i32) {
    %c0_i32 = arith.constant 0 : i32
    %c0_i32_0 = arith.constant 0 : i32
    %c0_i32_1 = arith.constant 0 : i32
    return %c0_i32, %c0_i32_0 : i32, i32
  }
  func.func @transform_6(%arg0: i32) -> (i32, i32) {
    %c0_i32 = arith.constant 0 : i32
    %c0_i32_0 = arith.constant 0 : i32
    %c0_i32_1 = arith.constant 0 : i32
    return %c0_i32, %c0_i32_0 : i32, i32
  }
  func.func @transform_7(%arg0: i32) -> (i32, i32) {
    %c0_i32 = arith.constant 0 : i32
    %c0_i32_0 = arith.constant 0 : i32
    %c0_i32_1 = arith.constant 0 : i32
    return %c0_i32, %c0_i32_0 : i32, i32
  }
  func.func @transform_8(%arg0: i32) -> (i32, i32) {
    %c0_i32 = arith.constant 0 : i32
    %c0_i32_0 = arith.constant 0 : i32
    %c0_i32_1 = arith.constant 0 : i32
    return %c0_i32, %c0_i32_0 : i32, i32
  }
  func.func @transform_9(%arg0: i32) -> (i32, i32) {
    %c0_i32 = arith.constant 0 : i32
    %c0_i32_0 = arith.constant 0 : i32
    return %c0_i32, %arg0 : i32, i32
  }
}

</mosaic_0001>

<llo_original>
// kernel: actorlog_forward.1
$region0: #{actorlog_forward.1}
  #allocation0 [shape = 'u32[]', space=smem, size = 0x4, offset = 0x4, fixed_abs, tag = 'smem constant byte address 0x4 - core index']
  #allocation1 [shape = 'u32[144,128]{1,0:T(1,128)}', space=vmem, size = 0x12000, scoped, tag = 'internal scratch']
  %s0 = inlined_call_operand.vmem [shape: f32[8,32], index: 0, kind: input, shape index: {}]
  %s1 = inlined_call_operand.vmem [shape: bf16[32,32], index: 1, kind: input, shape index: {}]
  %s2 = inlined_call_operand.vmem [shape: f32[32,1], index: 2, kind: input, shape index: {}]
  %s3 = inlined_call_operand.vmem [shape: bf16[32,32], index: 3, kind: input, shape index: {}]
  %s4 = inlined_call_operand.vmem [shape: f32[32,1], index: 4, kind: input, shape index: {}]
  %s5 = inlined_call_operand.vmem [shape: bf16[32,32], index: 5, kind: input, shape index: {}]
  %s6 = inlined_call_operand.vmem [shape: f32[32,1], index: 6, kind: input, shape index: {}]
  %s7 = inlined_call_operand.vmem [shape: bf16[8,32], index: 7, kind: input, shape index: {}]
  %s8 = inlined_call_operand.vmem [shape: f32[8,1], index: 8, kind: input, shape index: {}]
  %s9 = inlined_call_operand.vmem [shape: f32[8,8], index: 9, kind: output, shape index: {}]
  %s10 = sld [smem:[#allocation0]]
  $region46: #{actorlog_forward.1} parent=0
    _
  %s12 = ssub.s32 1, %s10
  %s13 = scalar_select 0, %s12, %s10
  // Predicated region
  $region2: #{actorlog_forward.1} parent=0 // pred_check
    _
  $region3: #{actorlog_forward.1} parent=0 // pred_check_branch
    %15 = sbr.rel (0) target = $region5
  $region4: #{actorlog_forward.1} parent=0 // pred_region
    _
  $region5: #{actorlog_forward.1} parent=0 // pred_fallthru
    _
  // Predicated region
  $region6: #{actorlog_forward.1} parent=0 // pred_check
    _
  $region7: #{actorlog_forward.1} parent=0 // pred_check_branch
    %17 = sbr.rel (0) target = $region9
  $region8: #{actorlog_forward.1} parent=0 // pred_region
    _
  $region9: #{actorlog_forward.1} parent=0 // pred_fallthru
    _
  // Predicated region
  $region10: #{actorlog_forward.1} parent=0 // pred_check
    _
  $region11: #{actorlog_forward.1} parent=0 // pred_check_branch
    %19 = sbr.rel (0) target = $region13
  $region12: #{actorlog_forward.1} parent=0 // pred_region
    _
  $region13: #{actorlog_forward.1} parent=0 // pred_fallthru
    _
  // Predicated region
  $region14: #{actorlog_forward.1} parent=0 // pred_check
    _
  $region15: #{actorlog_forward.1} parent=0 // pred_check_branch
    %21 = sbr.rel (0) target = $region17
  $region16: #{actorlog_forward.1} parent=0 // pred_region
    _
  $region17: #{actorlog_forward.1} parent=0 // pred_fallthru
    _
  // Predicated region
  $region18: #{actorlog_forward.1} parent=0 // pred_check
    _
  $region19: #{actorlog_forward.1} parent=0 // pred_check_branch
    %23 = sbr.rel (0) target = $region21
  $region20: #{actorlog_forward.1} parent=0 // pred_region
    _
  $region21: #{actorlog_forward.1} parent=0 // pred_fallthru
    _
  // Predicated region
  $region22: #{actorlog_forward.1} parent=0 // pred_check
    _
  $region23: #{actorlog_forward.1} parent=0 // pred_check_branch
    %25 = sbr.rel (0) target = $region25
  $region24: #{actorlog_forward.1} parent=0 // pred_region
    _
  $region25: #{actorlog_forward.1} parent=0 // pred_fallthru
    _
  // Predicated region
  $region26: #{actorlog_forward.1} parent=0 // pred_check
    _
  $region27: #{actorlog_forward.1} parent=0 // pred_check_branch
    %27 = sbr.rel (0) target = $region29
  $region28: #{actorlog_forward.1} parent=0 // pred_region
    _
  $region29: #{actorlog_forward.1} parent=0 // pred_fallthru
    _
  // Predicated region
  $region30: #{actorlog_forward.1} parent=0 // pred_check
    _
  $region31: #{actorlog_forward.1} parent=0 // pred_check_branch
    %29 = sbr.rel (0) target = $region33
  $region32: #{actorlog_forward.1} parent=0 // pred_region
    _
  $region33: #{actorlog_forward.1} parent=0 // pred_fallthru
    _
  // Predicated region
  $region34: #{actorlog_forward.1} parent=0 // pred_check
    _
  $region35: #{actorlog_forward.1} parent=0 // pred_check_branch
    %31 = sbr.rel (0) target = $region37
  $region36: #{actorlog_forward.1} parent=0 // pred_region
    _
  $region37: #{actorlog_forward.1} parent=0 // pred_fallthru
    _
  %v33 = vld [vmem:[%s0] sm:$0xff]
  %34 = vxpose.xlu0.b32.start [1/16] %v33, 128
  %35 = vxpose.xlu0.b32.cont [2/16] 0.0, 128
  %36 = vxpose.xlu0.b32.cont [3/16] 0.0, 128
  %37 = vxpose.xlu0.b32.cont [4/16] 0.0, 128
  %38 = vxpose.xlu0.b32.cont [5/16] 0.0, 128
  %39 = vxpose.xlu0.b32.cont [6/16] 0.0, 128
  %40 = vxpose.xlu0.b32.cont [7/16] 0.0, 128
  %41 = vxpose.xlu0.b32.cont [8/16] 0.0, 128
  %42 = vxpose.xlu0.b32.cont [9/16] 0.0, 128
  %43 = vxpose.xlu0.b32.cont [10/16] 0.0, 128
  %44 = vxpose.xlu0.b32.cont [11/16] 0.0, 128
  %45 = vxpose.xlu0.b32.cont [12/16] 0.0, 128
  %46 = vxpose.xlu0.b32.cont [13/16] 0.0, 128
  %47 = vxpose.xlu0.b32.cont [14/16] 0.0, 128
  %48 = vxpose.xlu0.b32.cont [15/16] 0.0, 128
  %49 = vxpose.xlu0.b32.end [16/16] 0.0, 128
  %v50 = vpop.trf.xlu0
  %v51 = vpop.trf.xlu0
  %v52 = vpop.trf.xlu0
  %v53 = vpop.trf.xlu0
  %v54 = vpop.trf.xlu0
  %v55 = vpop.trf.xlu0
  %v56 = vpop.trf.xlu0
  %v57 = vpop.trf.xlu0
  %v58 = vpop.trf.xlu0
  %v59 = vpop.trf.xlu0
  %v60 = vpop.trf.xlu0
  %v61 = vpop.trf.xlu0
  %v62 = vpop.trf.xlu0
  %v63 = vpop.trf.xlu0
  %v64 = vpop.trf.xlu0
  %v65 = vpop.trf.xlu0
  %v66 = vpack.c.bf16 %v51, %v50
  %v67 = vpack.c.bf16 %v53, %v52
  %v68 = vld [vmem:[%s1] sm:$0xf]
  %v69 = vld [vmem:[%s1 + $0x4] sm:$0xf]
  %v70 = vld [vmem:[%s1 + $0x8] sm:$0xf]
  %v71 = vld [vmem:[%s1 + $0xc] sm:$0xf]
  %v72 = vld [vmem:[%s2] sm:$0xff]
  %v73 = vld [vmem:[%s2 + $0x8] sm:$0xff]
  %v74 = vld [vmem:[%s2 + $0x10] sm:$0xff]
  %v75 = vld [vmem:[%s2 + $0x18] sm:$0xff]
  %77 = vset.pattern.permute.xlu0 0
  %78 = vperm.xlu0 %77, %v72
  %v79 = vpop.permute.xlu0 %78
  %82 = vset.pattern.permute.xlu0 0
  %83 = vperm.xlu0 %82, %v73
  %v84 = vpop.permute.xlu0 %83
  %87 = vset.pattern.permute.xlu0 0
  %88 = vperm.xlu0 %87, %v74
  %v89 = vpop.permute.xlu0 %88
  %92 = vset.pattern.permute.xlu0 0
  %93 = vperm.xlu0 %92, %v75
  %v94 = vpop.permute.xlu0 %93
  %v100 = vunpack.c.l.b16 %v68
  %v101 = vunpack.c.l.b16 %v69
  %v102 = vunpack.c.l.b16 %v70
  %v103 = vunpack.c.l.b16 %v71
  %v104 = vpack.c.b16 %v101, %v100
  %v105 = vpack.c.b16 %v103, %v102
  %vm106 = vcmask 261120
  %v108 = vsel %vm106, %v104, 0
  %v111 = vsel %vm106, %v105, 0
  %113 = vmatprep.subr.bf16.mxu0 0
  %114 = vmatpush1.bf16.msra.mxu0 %v66
  %115 = vmatprep.subr.bf16.mxu0 0
  %116 = vmatpush1.bf16.msra.mxu0 %v67
  %117 = vmatprep.subr.bf16.mxu0 0
  %118 = vmatpush1.bf16.msra.mxu0 0
  %119 = vmatprep.subr.bf16.mxu0 0
  %120 = vmatpush1.bf16.msra.mxu0 0
  %121 = vmatprep.subr.bf16.mxu0 0
  %122 = vmatpush1.bf16.msra.mxu0 0
  %123 = vmatprep.subr.bf16.mxu0 0
  %124 = vmatpush1.bf16.msra.mxu0 0
  %125 = vmatprep.subr.bf16.mxu0 0
  %126 = vmatpush1.bf16.msra.mxu0 0
  %127 = vmatprep.subr.bf16.mxu0 0
  %128 = vmatpush1.bf16.msra.mxu0 0
  %129 = vmatprep.subr.bf16.mxu0 0
  %130 = vmatpush1.bf16.msra.mxu0 0
  %131 = vmatprep.subr.bf16.mxu0 0
  %132 = vmatpush1.bf16.msra.mxu0 0
  %133 = vmatprep.subr.bf16.mxu0 0
  %134 = vmatpush1.bf16.msra.mxu0 0
  %135 = vmatprep.subr.bf16.mxu0 0
  %136 = vmatpush1.bf16.msra.mxu0 0
  %137 = vmatprep.subr.bf16.mxu0 0
  %138 = vmatpush1.bf16.msra.mxu0 0
  %139 = vmatprep.subr.bf16.mxu0 0
  %140 = vmatpush1.bf16.msra.mxu0 0
  %141 = vmatprep.subr.bf16.mxu0 0
  %142 = vmatpush1.bf16.msra.mxu0 0
  %143 = vmatprep.subr.bf16.mxu0 0
  %144 = vmatpush1.bf16.msra.mxu0 0
  %145 = vmatprep.mubr.bf16.mxu0 0
  %146 = vmatmul.mubr.bf16.gmra.mrb[0].mxu0 %v108
  %v147 = vpop.f32.mrb[0].mxu0
  %v148 = vadd.f32 %v79, %v147
  %v149 = vpop.f32.mrb[0].mxu0
  %v150 = vpop.f32.mrb[0].mxu0
  %v151 = vadd.f32 %v84, %v150
  %v152 = vpop.f32.mrb[0].mxu0
  %153 = vmatprep.mubr.bf16.mxu0 0
  %154 = vmatmul.mubr.bf16.gmra.mrb[0].mxu0 %v111
  %v155 = vpop.f32.mrb[0].mxu0
  %v156 = vadd.f32 %v89, %v155
  %v157 = vpop.f32.mrb[0].mxu0
  %v158 = vpop.f32.mrb[0].mxu0
  %v159 = vadd.f32 %v94, %v158
  %v160 = vpop.f32.mrb[0].mxu0
  %161 = vdwg.mxu0
  %v162 = vmax.f32 %v148, 0.0
  %v163 = vmax.f32 %v151, 0.0
  %v164 = vmax.f32 %v156, 0.0
  %v165 = vmax.f32 %v159, 0.0
  %v166 = vld [vmem:[%s3] sm:$0xf]
  %v167 = vld [vmem:[%s3 + $0x4] sm:$0xf]
  %v168 = vld [vmem:[%s3 + $0x8] sm:$0xf]
  %v169 = vld [vmem:[%s3 + $0xc] sm:$0xf]
  %v170 = vpack.c.bf16 %v163, %v162
  %v171 = vpack.c.bf16 %v165, %v164
  %v172 = vld [vmem:[%s4] sm:$0xff]
  %v173 = vld [vmem:[%s4 + $0x8] sm:$0xff]
  %v174 = vld [vmem:[%s4 + $0x10] sm:$0xff]
  %v175 = vld [vmem:[%s4 + $0x18] sm:$0xff]
  %177 = vset.pattern.permute.xlu0 0
  %178 = vperm.xlu0 %177, %v172
  %v179 = vpop.permute.xlu0 %178
  %182 = vset.pattern.permute.xlu0 0
  %183 = vperm.xlu0 %182, %v173
  %v184 = vpop.permute.xlu0 %183
  %187 = vset.pattern.permute.xlu0 0
  %188 = vperm.xlu0 %187, %v174
  %v189 = vpop.permute.xlu0 %188
  %192 = vset.pattern.permute.xlu0 0
  %193 = vperm.xlu0 %192, %v175
  %v194 = vpop.permute.xlu0 %193
  %v200 = vunpack.c.l.b16 %v166
  %v201 = vunpack.c.l.b16 %v167
  %v202 = vunpack.c.l.b16 %v168
  %v203 = vunpack.c.l.b16 %v169
  %v204 = vpack.c.b16 %v201, %v200
  %v205 = vpack.c.b16 %v203, %v202
  %v207 = vsel %vm106, %v204, 0
  %v210 = vsel %vm106, %v205, 0
  %212 = vmatprep.subr.bf16.mxu0 0
  %213 = vmatpush1.bf16.msra.mxu0 %v170
  %214 = vmatprep.subr.bf16.mxu0 0
  %215 = vmatpush1.bf16.msra.mxu0 %v171
  %216 = vmatprep.subr.bf16.mxu0 0
  %217 = vmatpush1.bf16.msra.mxu0 0
  %218 = vmatprep.subr.bf16.mxu0 0
  %219 = vmatpush1.bf16.msra.mxu0 0
  %220 = vmatprep.subr.bf16.mxu0 0
  %221 = vmatpush1.bf16.msra.mxu0 0
  %222 = vmatprep.subr.bf16.mxu0 0
  %223 = vmatpush1.bf16.msra.mxu0 0
  %224 = vmatprep.subr.bf16.mxu0 0
  %225 = vmatpush1.bf16.msra.mxu0 0
  %226 = vmatprep.subr.bf16.mxu0 0
  %227 = vmatpush1.bf16.msra.mxu0 0
  %228 = vmatprep.subr.bf16.mxu0 0
  %229 = vmatpush1.bf16.msra.mxu0 0
  %230 = vmatprep.subr.bf16.mxu0 0
  %231 = vmatpush1.bf16.msra.mxu0 0
  %232 = vmatprep.subr.bf16.mxu0 0
  %233 = vmatpush1.bf16.msra.mxu0 0
  %234 = vmatprep.subr.bf16.mxu0 0
  %235 = vmatpush1.bf16.msra.mxu0 0
  %236 = vmatprep.subr.bf16.mxu0 0
  %237 = vmatpush1.bf16.msra.mxu0 0
  %238 = vmatprep.subr.bf16.mxu0 0
  %239 = vmatpush1.bf16.msra.mxu0 0
  %240 = vmatprep.subr.bf16.mxu0 0
  %241 = vmatpush1.bf16.msra.mxu0 0
  %242 = vmatprep.subr.bf16.mxu0 0
  %243 = vmatpush1.bf16.msra.mxu0 0
  %244 = vmatprep.mubr.bf16.mxu0 0
  %245 = vmatmul.mubr.bf16.gmra.mrb[0].mxu0 %v207
  %v246 = vpop.f32.mrb[0].mxu0
  %v247 = vadd.f32 %v179, %v246
  %v248 = vpop.f32.mrb[0].mxu0
  %v249 = vpop.f32.mrb[0].mxu0
  %v250 = vadd.f32 %v184, %v249
  %v251 = vpop.f32.mrb[0].mxu0
  %252 = vmatprep.mubr.bf16.mxu0 0
  %253 = vmatmul.mubr.bf16.gmra.mrb[0].mxu0 %v210
  %v254 = vpop.f32.mrb[0].mxu0
  %v255 = vadd.f32 %v189, %v254
  %v256 = vpop.f32.mrb[0].mxu0
  %v257 = vpop.f32.mrb[0].mxu0
  %v258 = vadd.f32 %v194, %v257
  %v259 = vpop.f32.mrb[0].mxu0
  %260 = vdwg.mxu0
  %v261 = vmax.f32 %v247, 0.0
  %v262 = vmax.f32 %v250, 0.0
  %v263 = vmax.f32 %v255, 0.0
  %v264 = vmax.f32 %v258, 0.0
  %v265 = vld [vmem:[%s5] sm:$0xf]
  %v266 = vld [vmem:[%s5 + $0x4] sm:$0xf]
  %v267 = vld [vmem:[%s5 + $0x8] sm:$0xf]
  %v268 = vld [vmem:[%s5 + $0xc] sm:$0xf]
  %v269 = vpack.c.bf16 %v262, %v261
  %v270 = vpack.c.bf16 %v264, %v263
  %v271 = vld [vmem:[%s6] sm:$0xff]
  %v272 = vld [vmem:[%s6 + $0x8] sm:$0xff]
  %v273 = vld [vmem:[%s6 + $0x10] sm:$0xff]
  %v274 = vld [vmem:[%s6 + $0x18] sm:$0xff]
  %276 = vset.pattern.permute.xlu0 0
  %277 = vperm.xlu0 %276, %v271
  %v278 = vpop.permute.xlu0 %277
  %281 = vset.pattern.permute.xlu0 0
  %282 = vperm.xlu0 %281, %v272
  %v283 = vpop.permute.xlu0 %282
  %286 = vset.pattern.permute.xlu0 0
  %287 = vperm.xlu0 %286, %v273
  %v288 = vpop.permute.xlu0 %287
  %291 = vset.pattern.permute.xlu0 0
  %292 = vperm.xlu0 %291, %v274
  %v293 = vpop.permute.xlu0 %292
  %v299 = vunpack.c.l.b16 %v265
  %v300 = vunpack.c.l.b16 %v266
  %v301 = vunpack.c.l.b16 %v267
  %v302 = vunpack.c.l.b16 %v268
  %v303 = vpack.c.b16 %v300, %v299
  %v304 = vpack.c.b16 %v302, %v301
  %v306 = vsel %vm106, %v303, 0
  %v309 = vsel %vm106, %v304, 0
  %311 = vmatprep.subr.bf16.mxu0 0
  %312 = vmatpush1.bf16.msra.mxu0 %v269
  %313 = vmatprep.subr.bf16.mxu0 0
  %314 = vmatpush1.bf16.msra.mxu0 %v270
  %315 = vmatprep.subr.bf16.mxu0 0
  %316 = vmatpush1.bf16.msra.mxu0 0
  %317 = vmatprep.subr.bf16.mxu0 0
  %318 = vmatpush1.bf16.msra.mxu0 0
  %319 = vmatprep.subr.bf16.mxu0 0
  %320 = vmatpush1.bf16.msra.mxu0 0
  %321 = vmatprep.subr.bf16.mxu0 0
  %322 = vmatpush1.bf16.msra.mxu0 0
  %323 = vmatprep.subr.bf16.mxu0 0
  %324 = vmatpush1.bf16.msra.mxu0 0
  %325 = vmatprep.subr.bf16.mxu0 0
  %326 = vmatpush1.bf16.msra.mxu0 0
  %327 = vmatprep.subr.bf16.mxu0 0
  %328 = vmatpush1.bf16.msra.mxu0 0
  %329 = vmatprep.subr.bf16.mxu0 0
  %330 = vmatpush1.bf16.msra.mxu0 0
  %331 = vmatprep.subr.bf16.mxu0 0
  %332 = vmatpush1.bf16.msra.mxu0 0
  %333 = vmatprep.subr.bf16.mxu0 0
  %334 = vmatpush1.bf16.msra.mxu0 0
  %335 = vmatprep.subr.bf16.mxu0 0
  %336 = vmatpush1.bf16.msra.mxu0 0
  %337 = vmatprep.subr.bf16.mxu0 0
  %338 = vmatpush1.bf16.msra.mxu0 0
  %339 = vmatprep.subr.bf16.mxu0 0
  %340 = vmatpush1.bf16.msra.mxu0 0
  %341 = vmatprep.subr.bf16.mxu0 0
  %342 = vmatpush1.bf16.msra.mxu0 0
  %343 = vmatprep.mubr.bf16.mxu0 0
  %344 = vmatmul.mubr.bf16.gmra.mrb[0].mxu0 %v306
  %v345 = vpop.f32.mrb[0].mxu0
  %v346 = vadd.f32 %v278, %v345
  %v347 = vpop.f32.mrb[0].mxu0
  %v348 = vpop.f32.mrb[0].mxu0
  %v349 = vadd.f32 %v283, %v348
  %v350 = vpop.f32.mrb[0].mxu0
  %351 = vmatprep.mubr.bf16.mxu0 0
  %352 = vmatmul.mubr.bf16.gmra.mrb[0].mxu0 %v309
  %v353 = vpop.f32.mrb[0].mxu0
  %v354 = vadd.f32 %v288, %v353
  %v355 = vpop.f32.mrb[0].mxu0
  %v356 = vpop.f32.mrb[0].mxu0
  %v357 = vadd.f32 %v293, %v356
  %v358 = vpop.f32.mrb[0].mxu0
  %359 = vdwg.mxu0
  %v360 = vmax.f32 %v346, 0.0
  %v361 = vmax.f32 %v349, 0.0
  %v362 = vmax.f32 %v354, 0.0
  %v363 = vmax.f32 %v357, 0.0
  %v364 = vld [vmem:[%s7] sm:$0xf]
  %v365 = vpack.c.bf16 %v361, %v360
  %v366 = vpack.c.bf16 %v363, %v362
  %v367 = vld [vmem:[%s8] sm:$0xff]
  %369 = vset.pattern.permute.xlu0 0
  %370 = vperm.xlu0 %369, %v367
  %v371 = vpop.permute.xlu0 %370
  %v374 = vsel %vm106, %v364, 0
  %376 = vmatprep.subr.bf16.mxu0 0
  %377 = vmatpush1.bf16.msra.mxu0 %v365
  %378 = vmatprep.subr.bf16.mxu0 0
  %379 = vmatpush1.bf16.msra.mxu0 %v366
  %380 = vmatprep.subr.bf16.mxu0 0
  %381 = vmatpush1.bf16.msra.mxu0 0
  %382 = vmatprep.subr.bf16.mxu0 0
  %383 = vmatpush1.bf16.msra.mxu0 0
  %384 = vmatprep.subr.bf16.mxu0 0
  %385 = vmatpush1.bf16.msra.mxu0 0
  %386 = vmatprep.subr.bf16.mxu0 0
  %387 = vmatpush1.bf16.msra.mxu0 0
  %388 = vmatprep.subr.bf16.mxu0 0
  %389 = vmatpush1.bf16.msra.mxu0 0
  %390 = vmatprep.subr.bf16.mxu0 0
  %391 = vmatpush1.bf16.msra.mxu0 0
  %392 = vmatprep.subr.bf16.mxu0 0
  %393 = vmatpush1.bf16.msra.mxu0 0
  %394 = vmatprep.subr.bf16.mxu0 0
  %395 = vmatpush1.bf16.msra.mxu0 0
  %396 = vmatprep.subr.bf16.mxu0 0
  %397 = vmatpush1.bf16.msra.mxu0 0
  %398 = vmatprep.subr.bf16.mxu0 0
  %399 = vmatpush1.bf16.msra.mxu0 0
  %400 = vmatprep.subr.bf16.mxu0 0
  %401 = vmatpush1.bf16.msra.mxu0 0
  %402 = vmatprep.subr.bf16.mxu0 0
  %403 = vmatpush1.bf16.msra.mxu0 0
  %404 = vmatprep.subr.bf16.mxu0 0
  %405 = vmatpush1.bf16.msra.mxu0 0
  %406 = vmatprep.subr.bf16.mxu0 0
  %407 = vmatpush1.bf16.msra.mxu0 0
  %408 = vmatprep.mubr.bf16.mxu0 0
  %409 = vmatmul.mubr.bf16.gmra.mrb[0].mxu0 %v374
  %v410 = vpop.f32.mrb[0].mxu0
  %v411 = vadd.f32 %v371, %v410
  %v412 = vpop.f32.mrb[0].mxu0
  %v413 = vpop.f32.mrb[0].mxu0
  %v414 = vpop.f32.mrb[0].mxu0
  %415 = vdwg.mxu0
  %v416 = vtanh.pop %v411
  %vm417 = vcmask 64512
  %418 = vst.msk [vmem:[%s9] sm:$0xff] %vm417, %v416
  // Predicated region
  $region38: #{actorlog_forward.1} parent=0 // pred_check
    _
  $region39: #{actorlog_forward.1} parent=0 // pred_check_branch
    %420 = sbr.rel (0) target = $region41
  $region40: #{actorlog_forward.1} parent=0 // pred_region
    _
  $region41: #{actorlog_forward.1} parent=0 // pred_fallthru
    _
  // Predicated region
  $region42: #{actorlog_forward.1} parent=0 // pred_check
    _
  $region43: #{actorlog_forward.1} parent=0 // pred_check_branch
    %422 = sbr.rel (0) target = $region45
  $region44: #{actorlog_forward.1} parent=0 // pred_region
    _
  $region45: #{actorlog_forward.1} parent=0 // pred_fallthru
    _

</llo_original>
